<compile_context>
chip_gen: v5e
topology: v5e:2x2
jax: 0.10.0
libtpu: 0.0.40
codegen_flags: <defaults>
</compile_context>

<pallas_src>
import functools
import math

import jax
import jax.numpy as jnp
import numpy as np
from jax.experimental import pallas as pl
from jax.experimental.pallas import tpu as pltpu


def _new_gelu(x):
    # exact reproduction of the reference NewGelu (including its omission of "x +"),
    # with x*x*x instead of jnp.power (pure VPU multiplies; tanh stays on the EUP).
    x3 = x * x * x
    return 0.5 * x * (1.0 + jnp.tanh(math.sqrt(2.0 / math.pi) * (x * 0.044715 * x3)))


def block_kernel(x_ref, wq_ref, wk_ref, wv_ref, bq_ref, bk_ref, bv_ref,
                 wout_ref, bout_ref, ln1w_ref, ln1b_ref,
                 wl1_ref, bl1_ref, wl2_ref, bl2_ref,
                 o_ref, xmd_ref, acc_ref, *, BB, T, C, H, D, scale, md):
    """Grid step (i, head): one attention head for a block of BB batch elements."""
    head = pl.program_id(1)
    R = BB * T

    @pl.when(head == 0)
    def _():
        # cast the activations to the matmul dtype once per batch block and zero
        # the attention-output accumulator.
        xmd_ref[...] = x_ref[...].reshape(R, C).astype(md)
        acc_ref[...] = jnp.zeros_like(acc_ref)

    xm = xmd_ref[...]                                                # (R, C) bf16

    # ---- per-head Q/K/V projection (2-D MXU dots, f32 accumulation) ----
    q = (jnp.dot(xm, wq_ref[...], preferred_element_type=jnp.float32)
         + bq_ref[...]) * scale                                      # (R, D)
    k = jnp.dot(xm, wk_ref[...], preferred_element_type=jnp.float32) + bk_ref[...]
    v = jnp.dot(xm, wv_ref[...], preferred_element_type=jnp.float32) + bv_ref[...]

    q3 = q.reshape(BB, T, D).astype(md)                              # free leading split
    k3 = k.reshape(BB, T, D).astype(md)
    v3 = v.reshape(BB, T, D).astype(md)

    # ---- scores + softmax (mask buffer is all-ones in the reference -> no
    #      causal masking, plain softmax over keys) ----
    s = jnp.einsum('btd,bsd->bts', q3, k3,
                   preferred_element_type=jnp.float32)               # (BB, T, T)
    s = s - jnp.max(s, axis=-1, keepdims=True)
    p = jnp.exp(s)
    p = p * pl.reciprocal(jnp.sum(p, axis=-1, keepdims=True), approx=True)

    o = jnp.einsum('bts,bsd->btd', p.astype(md), v3,
                   preferred_element_type=jnp.float32)               # (BB, T, D)

    # ---- output projection fused with the head reduction: acc += o_h @ wout_h ----
    acc_ref[...] += jnp.dot(o.reshape(R, D).astype(md), wout_ref[...],
                            preferred_element_type=jnp.float32)      # (R, C)

    # ---- last head: bias, LayerNorm, residual, MLP, store ----
    @pl.when(head == H - 1)
    def _():
        x32 = x_ref[...].reshape(R, C).astype(jnp.float32)
        attn = acc_ref[...] + bout_ref[...]                          # (R, C)

        mu = jnp.mean(attn, axis=-1, keepdims=True)
        var = jnp.mean(jnp.square(attn - mu), axis=-1, keepdims=True)
        ln = (attn - mu) * jax.lax.rsqrt(var + 1e-5) * ln1w_ref[...] + ln1b_ref[...]
        r1 = ln + x32

        h1 = jnp.dot(r1.astype(md), wl1_ref[...],
                     preferred_element_type=jnp.float32) + bl1_ref[...]   # (R, 4C)
        g = _new_gelu(h1)
        m = jnp.dot(g.astype(md), wl2_ref[...],
                    preferred_element_type=jnp.float32) + bl2_ref[...]
        o_ref[...] = (m + r1).reshape(BB, T, C).astype(o_ref.dtype)


def _pick_batch_block(B, T, *, target_rows=256):
    """Largest divisor BB of B such that
       * BB*T <= target_rows (fills the 256-wide MXU M dim on v6e/v7x), and
       * B // BB >= 2 so the parallel batch grid axis has >= 2 steps (both v7x
         TensorCores usable, x-block DMA/compute overlap).
    Per-step VMEM is O(BB*T*8C + BB*T^2) f32 -- re-derive for v7x (64 MiB) if
    T or C grow large; for T >~ 1k use the flash-style TODO instead."""
    cap = max(1, target_rows // max(T, 1))
    if B >= 2:
        cap = min(cap, B // 2)
    bb = 1
    for d in range(1, B + 1):
        if B % d == 0 and d <= cap:
            bb = d
    return bb


def _head_spec(arr):
    # (H, a, b) array -> per-head (a, b) block selected by the head grid index.
    return pl.BlockSpec((None,) + arr.shape[1:], lambda i, h: (h, 0, 0))


def _full_spec(arr):
    # whole array resident with a constant index -> fetched once, no re-DMA.
    return pl.BlockSpec(arr.shape, lambda i, h, _nd=arr.ndim: (0,) * _nd)


def gpt_block(x, params, num_heads, *, matmul_dtype=jnp.bfloat16):
    B, T, C = x.shape
    H = num_heads
    D = C // H
    scale = 1.0 / math.sqrt(D)
    md = matmul_dtype

    # --- wrapper-side weight massaging (runs once, outside the kernel) ---
    # Split the fused c_attn weights into per-head (H, C, D) / (H, 1, D) arrays so
    # the BlockSpec can deliver one head's weights per grid step; reshape out_proj
    # to (H, D, C); cast weight matrices to bf16 (MXU-native), biases stay f32.
    wqkv, bqkv = params["wqkv"], params["bqkv"]

    def split_w(w):   # (C, C) -> (H, C, D)
        return jnp.transpose(w.reshape(C, H, D), (1, 0, 2))

    def split_b(b):   # (1, C) -> (H, 1, D)
        return jnp.transpose(b.reshape(1, H, D), (1, 0, 2))

    wq = split_w(wqkv[:, 0 * C:1 * C]).astype(md)
    wk = split_w(wqkv[:, 1 * C:2 * C]).astype(md)
    wv = split_w(wqkv[:, 2 * C:3 * C]).astype(md)
    bq = split_b(bqkv[:, 0 * C:1 * C])
    bk = split_b(bqkv[:, 1 * C:2 * C])
    bv = split_b(bqkv[:, 2 * C:3 * C])
    wout_h = params["wout"].reshape(H, D, C).astype(md)

    args = (
        x,
        wq, wk, wv, bq, bk, bv, wout_h,
        params["bout"], params["ln1w"], params["ln1b"],
        params["wl1"].astype(md), params["bl1"],
        params["wl2"].astype(md), params["bl2"],
    )

    BB = _pick_batch_block(B, T)
    R = BB * T
    kernel = functools.partial(block_kernel, BB=BB, T=T, C=C, H=H, D=D,
                               scale=scale, md=md)

    in_specs = (
        [pl.BlockSpec((BB, T, C), lambda i, h: (i, 0, 0))]            # x
        + [_head_spec(a) for a in (wq, wk, wv, bq, bk, bv, wout_h)]   # per-head
        + [_full_spec(a) for a in args[8:]]                           # shared
    )

    out = pl.pallas_call(
        kernel,
        out_shape=jax.ShapeDtypeStruct((B, T, C), x.dtype),
        grid=(B // BB, H),
        in_specs=in_specs,
        out_specs=pl.BlockSpec((BB, T, C), lambda i, h: (i, 0, 0)),
        scratch_shapes=[pltpu.VMEM((R, C), md),          # bf16 copy of the x block
                        pltpu.VMEM((R, C), jnp.float32)],  # attention accumulator
        compiler_params=pltpu.CompilerParams(
            dimension_semantics=("parallel", "arbitrary"),
            vmem_limit_bytes=48 * 1024 * 1024,   # < v7x 64 MiB physical; headroom on v5e/v6e
        ),
    )(*args)
    return out


def reference_block(x, p, num_heads):
    """Plain-JAX mirror of the PyTorch forward (eval mode), f32 end-to-end."""
    B, T, C = x.shape
    H = num_heads
    D = C // H
    qkv = x @ p["wqkv"] + p["bqkv"][0]
    q, k, v = qkv[..., :C], qkv[..., C:2 * C], qkv[..., 2 * C:]
    q = q.reshape(B, T, H, D).transpose(0, 2, 1, 3)
    k = k.reshape(B, T, H, D).transpose(0, 2, 1, 3)
    v = v.reshape(B, T, H, D).transpose(0, 2, 1, 3)
    att = (q @ jnp.swapaxes(k, -2, -1)) * (1.0 / math.sqrt(D))
    att = jax.nn.softmax(att, axis=-1)
    y = (att @ v).transpose(0, 2, 1, 3).reshape(B, T, C)
    attn_out = y @ p["wout"] + p["bout"][0]
    mu = attn_out.mean(-1, keepdims=True)
    var = ((attn_out - mu) ** 2).mean(-1, keepdims=True)
    ln = (attn_out - mu) / jnp.sqrt(var + 1e-5) * p["ln1w"][0] + p["ln1b"][0]
    r1 = ln + x
    h = r1 @ p["wl1"] + p["bl1"][0]
    h = 0.5 * h * (1.0 + jnp.tanh(math.sqrt(2.0 / math.pi) * (h * 0.044715 * h ** 3)))
    r2 = h @ p["wl2"] + p["bl2"][0] + r1
    return r2


if __name__ == "__main__":
    # small config consistent with the module: emb_size=32, num_heads=4, block_size(T)=8
    B, T, C, H = 2, 8, 32, 4
    key = jax.random.PRNGKey(0)
    ks = jax.random.split(key, 12)

    def init(k, shape, scale=0.02):
        return (scale * jax.random.normal(k, shape)).astype(jnp.float32)

    params = {
        "wqkv": init(ks[0], (C, 3 * C)),
        "bqkv": init(ks[1], (1, 3 * C)),
        "wout": init(ks[2], (C, C)),
        "bout": init(ks[3], (1, C)),
        "ln1w": jnp.ones((1, C), jnp.float32),
        "ln1b": jnp.zeros((1, C), jnp.float32),
        "wl1": init(ks[4], (C, 4 * C)),
        "bl1": init(ks[5], (1, 4 * C)),
        "wl2": init(ks[6], (4 * C, C)),
        "bl2": init(ks[7], (1, C)),
    }
    x = jax.random.normal(ks[8], (B, T, C), jnp.float32)

    out = jax.block_until_ready(gpt_block(x, params, num_heads=H))

    # (a) kernel math vs. a reference that uses the same bf16-rounded weights the
    #     kernel sees (isolates kernel correctness from the intended bf16 weight cast).
    params_q = dict(params)
    for name in ("wqkv", "wout", "wl1", "wl2"):
        params_q[name] = params[name].astype(jnp.bfloat16).astype(jnp.float32)
    ref_q = jax.block_until_ready(reference_block(x, params_q, num_heads=H))
    np.testing.assert_allclose(np.asarray(out), np.asarray(ref_q), rtol=2e-2, atol=2e-2)

    # (b) fidelity to the full-f32 module reference (looser tol: bf16 MXU operands).
    ref = jax.block_until_ready(reference_block(x, params, num_heads=H))
    np.testing.assert_allclose(np.asarray(out), np.asarray(ref), rtol=5e-2, atol=5e-2)

    print("KERNEL_OK")
</pallas_src>

<mosaic_0001>
module attributes {stable_mosaic.version = 11 : i64} {
  func.func @block_kernel(%arg0: i32, %arg1: i32, %arg2: memref<1x8x32xf32, #tpu.memory_space<vmem>>, %arg3: memref<1x32x8xbf16, #tpu.memory_space<vmem>>, %arg4: memref<1x32x8xbf16, #tpu.memory_space<vmem>>, %arg5: memref<1x32x8xbf16, #tpu.memory_space<vmem>>, %arg6: memref<1x1x8xf32, #tpu.memory_space<vmem>>, %arg7: memref<1x1x8xf32, #tpu.memory_space<vmem>>, %arg8: memref<1x1x8xf32, #tpu.memory_space<vmem>>, %arg9: memref<1x8x32xbf16, #tpu.memory_space<vmem>>, %arg10: memref<1x32xf32, #tpu.memory_space<vmem>>, %arg11: memref<1x32xf32, #tpu.memory_space<vmem>>, %arg12: memref<1x32xf32, #tpu.memory_space<vmem>>, %arg13: memref<32x128xbf16, #tpu.memory_space<vmem>>, %arg14: memref<1x128xf32, #tpu.memory_space<vmem>>, %arg15: memref<128x32xbf16, #tpu.memory_space<vmem>>, %arg16: memref<1x32xf32, #tpu.memory_space<vmem>>, %arg17: memref<1x8x32xf32, #tpu.memory_space<vmem>>, %arg18: memref<8x32xbf16, #tpu.memory_space<vmem>>, %arg19: memref<8x32xf32, #tpu.memory_space<vmem>>) attributes {dimension_semantics = [#tpu.dimension_semantics<parallel>, #tpu.dimension_semantics<arbitrary>], iteration_bounds = array<i64: 2, 4>, scalar_prefetch = 0 : i64, scratch_operands = 2 : i64, tpu.core_type = #tpu.core_type<tc>, window_params = [{transform_indices = @transform_0, window_bounds = array<i64: 1, 8, 32>}, {transform_indices = @transform_1, window_bounds = array<i64: 1, 32, 8>}, {transform_indices = @transform_2, window_bounds = array<i64: 1, 32, 8>}, {transform_indices = @transform_3, window_bounds = array<i64: 1, 32, 8>}, {transform_indices = @transform_4, window_bounds = array<i64: 1, 1, 8>}, {transform_indices = @transform_5, window_bounds = array<i64: 1, 1, 8>}, {transform_indices = @transform_6, window_bounds = array<i64: 1, 1, 8>}, {transform_indices = @transform_7, window_bounds = array<i64: 1, 8, 32>}, {pipeline_mode = #tpu.pipeline_mode<synchronous>, transform_indices = @transform_8, window_bounds = array<i64: 1, 32>}, {pipeline_mode = #tpu.pipeline_mode<synchronous>, transform_indices = @transform_9, window_bounds = array<i64: 1, 32>}, {pipeline_mode = #tpu.pipeline_mode<synchronous>, transform_indices = @transform_10, window_bounds = array<i64: 1, 32>}, {pipeline_mode = #tpu.pipeline_mode<synchronous>, transform_indices = @transform_11, window_bounds = array<i64: 32, 128>}, {pipeline_mode = #tpu.pipeline_mode<synchronous>, transform_indices = @transform_12, window_bounds = array<i64: 1, 128>}, {pipeline_mode = #tpu.pipeline_mode<synchronous>, transform_indices = @transform_13, window_bounds = array<i64: 128, 32>}, {pipeline_mode = #tpu.pipeline_mode<synchronous>, transform_indices = @transform_14, window_bounds = array<i64: 1, 32>}, {transform_indices = @transform_15, window_bounds = array<i64: 1, 8, 32>}]} {
    %c0_i32 = arith.constant 0 : i32
    %0 = arith.cmpi eq, %arg1, %c0_i32 : i32
    %1 = arith.extui %0 : i1 to i32
    %c0_i32_0 = arith.constant 0 : i32
    %2 = arith.cmpi ne, %1, %c0_i32_0 : i32
    scf.if %2 {
      %c0_36 = arith.constant 0 : index
      %c0_37 = arith.constant 0 : index
      %c0_38 = arith.constant 0 : index
      %57 = vector.load %arg2[%c0_36, %c0_37, %c0_38] : memref<1x8x32xf32, #tpu.memory_space<vmem>>, vector<1x8x32xf32>
      %58 = vector.shape_cast %57 : vector<1x8x32xf32> to vector<8x32xf32>
      %59 = arith.truncf %58 : vector<8x32xf32> to vector<8x32xbf16>
      %c0_39 = arith.constant 0 : index
      %c0_40 = arith.constant 0 : index
      %60 = vector.load %arg18[%c0_39, %c0_40] : memref<8x32xbf16, #tpu.memory_space<vmem>>, vector<8x32xbf16>
      tpu.vector_store %arg18[%c0_39, %c0_40], %59 {strides = array<i32>} : memref<8x32xbf16, #tpu.memory_space<vmem>>, vector<8x32xbf16>,
      %cst_41 = arith.constant 0.000000e+00 : f32
      %61 = vector.broadcast %cst_41 : f32 to vector<8x32xf32>
      %c0_42 = arith.constant 0 : index
      %c0_43 = arith.constant 0 : index
      %62 = vector.load %arg19[%c0_42, %c0_43] : memref<8x32xf32, #tpu.memory_space<vmem>>, vector<8x32xf32>
      tpu.vector_store %arg19[%c0_42, %c0_43], %61 {strides = array<i32>} : memref<8x32xf32, #tpu.memory_space<vmem>>, vector<8x32xf32>,
    } else {
    }
    %c0 = arith.constant 0 : index
    %c0_1 = arith.constant 0 : index
    %3 = vector.load %arg18[%c0, %c0_1] : memref<8x32xbf16, #tpu.memory_space<vmem>>, vector<8x32xbf16>
    %c0_2 = arith.constant 0 : index
    %c0_3 = arith.constant 0 : index
    %c0_4 = arith.constant 0 : index
    %4 = vector.load %arg3[%c0_2, %c0_3, %c0_4] : memref<1x32x8xbf16, #tpu.memory_space<vmem>>, vector<1x32x8xbf16>
    %5 = vector.shape_cast %4 : vector<1x32x8xbf16> to vector<32x8xbf16>
    %cst = arith.constant dense<0.000000e+00> : vector<8x8xf32>
    %6 = tpu.matmul %3, %5, %cst {dimension_numbers = #tpu.dot_dimension_numbers<[1], [0], [0], [1], [0, 0, 1, 1], [], []>} : vector<8x32xbf16>, vector<32x8xbf16>, vector<8x8xf32> -> vector<8x8xf32>
    %c0_5 = arith.constant 0 : index
    %c0_6 = arith.constant 0 : index
    %c0_7 = arith.constant 0 : index
    %7 = vector.load %arg6[%c0_5, %c0_6, %c0_7] : memref<1x1x8xf32, #tpu.memory_space<vmem>>, vector<1x1x8xf32>
    %8 = vector.shape_cast %7 : vector<1x1x8xf32> to vector<1x8xf32>
    %9 = vector.broadcast %8 : vector<1x8xf32> to vector<8x8xf32>
    %10 = arith.addf %6, %9 : vector<8x8xf32>
    %cst_8 = arith.constant 0.353553385 : f32
    %11 = vector.broadcast %cst_8 : f32 to vector<8x8xf32>
    %12 = arith.mulf %10, %11 : vector<8x8xf32>
    %c0_9 = arith.constant 0 : index
    %c0_10 = arith.constant 0 : index
    %c0_11 = arith.constant 0 : index
    %13 = vector.load %arg4[%c0_9, %c0_10, %c0_11] : memref<1x32x8xbf16, #tpu.memory_space<vmem>>, vector<1x32x8xbf16>
    %14 = vector.shape_cast %13 : vector<1x32x8xbf16> to vector<32x8xbf16>
    %cst_12 = arith.constant dense<0.000000e+00> : vector<8x8xf32>
    %15 = tpu.matmul %3, %14, %cst_12 {dimension_numbers = #tpu.dot_dimension_numbers<[1], [0], [0], [1], [0, 0, 1, 1], [], []>} : vector<8x32xbf16>, vector<32x8xbf16>, vector<8x8xf32> -> vector<8x8xf32>
    %c0_13 = arith.constant 0 : index
    %c0_14 = arith.constant 0 : index
    %c0_15 = arith.constant 0 : index
    %16 = vector.load %arg7[%c0_13, %c0_14, %c0_15] : memref<1x1x8xf32, #tpu.memory_space<vmem>>, vector<1x1x8xf32>
    %17 = vector.shape_cast %16 : vector<1x1x8xf32> to vector<1x8xf32>
    %18 = vector.broadcast %17 : vector<1x8xf32> to vector<8x8xf32>
    %19 = arith.addf %15, %18 : vector<8x8xf32>
    %c0_16 = arith.constant 0 : index
    %c0_17 = arith.constant 0 : index
    %c0_18 = arith.constant 0 : index
    %20 = vector.load %arg5[%c0_16, %c0_17, %c0_18] : memref<1x32x8xbf16, #tpu.memory_space<vmem>>, vector<1x32x8xbf16>
    %21 = vector.shape_cast %20 : vector<1x32x8xbf16> to vector<32x8xbf16>
    %cst_19 = arith.constant dense<0.000000e+00> : vector<8x8xf32>
    %22 = tpu.matmul %3, %21, %cst_19 {dimension_numbers = #tpu.dot_dimension_numbers<[1], [0], [0], [1], [0, 0, 1, 1], [], []>} : vector<8x32xbf16>, vector<32x8xbf16>, vector<8x8xf32> -> vector<8x8xf32>
    %c0_20 = arith.constant 0 : index
    %c0_21 = arith.constant 0 : index
    %c0_22 = arith.constant 0 : index
    %23 = vector.load %arg8[%c0_20, %c0_21, %c0_22] : memref<1x1x8xf32, #tpu.memory_space<vmem>>, vector<1x1x8xf32>
    %24 = vector.shape_cast %23 : vector<1x1x8xf32> to vector<1x8xf32>
    %25 = vector.broadcast %24 : vector<1x8xf32> to vector<8x8xf32>
    %26 = arith.addf %22, %25 : vector<8x8xf32>
    %27 = vector.shape_cast %12 : vector<8x8xf32> to vector<1x8x8xf32>
    %28 = arith.truncf %27 : vector<1x8x8xf32> to vector<1x8x8xbf16>
    %29 = vector.shape_cast %19 : vector<8x8xf32> to vector<1x8x8xf32>
    %30 = arith.truncf %29 : vector<1x8x8xf32> to vector<1x8x8xbf16>
    %31 = vector.shape_cast %26 : vector<8x8xf32> to vector<1x8x8xf32>
    %32 = arith.truncf %31 : vector<1x8x8xf32> to vector<1x8x8xbf16>
    "tpu.trace_start"() <{level = 10 : i32, message = "btd,bsd->bts"}> : () -> ()
    %cst_23 = arith.constant dense<0.000000e+00> : vector<1x8x8xf32>
    %33 = tpu.matmul %28, %30, %cst_23 {dimension_numbers = #tpu.dot_dimension_numbers<[2], [2], [1], [1], [0, 0, 0, 1, 1, 1], [0], [0]>} : vector<1x8x8xbf16>, vector<1x8x8xbf16>, vector<1x8x8xf32> -> vector<1x8x8xf32>
    "tpu.trace_stop"() : () -> ()
    %cst_24 = arith.constant dense<0xFF800000> : vector<1x8xf32>
    %34 = vector.multi_reduction <maximumf>, %33, %cst_24 [2] : vector<1x8x8xf32> to vector<1x8xf32>
    %35 = vector.shape_cast %34 : vector<1x8xf32> to vector<1x8x1xf32>
    %36 = vector.broadcast %35 : vector<1x8x1xf32> to vector<1x8x8xf32>
    %37 = arith.subf %33, %36 : vector<1x8x8xf32>
    %38 = math.exp %37 : vector<1x8x8xf32>
    %cst_25 = arith.constant dense<0.000000e+00> : vector<1x8xf32>
    %39 = vector.multi_reduction <add>, %38, %cst_25 [2] : vector<1x8x8xf32> to vector<1x8xf32>
    %40 = vector.shape_cast %39 : vector<1x8xf32> to vector<1x8x1xf32>
    %41 = tpu.reciprocal %40 {approx = true} : vector<1x8x1xf32> -> vector<1x8x1xf32>
    %42 = vector.broadcast %41 : vector<1x8x1xf32> to vector<1x8x8xf32>
    %43 = arith.mulf %38, %42 : vector<1x8x8xf32>
    %44 = arith.truncf %43 : vector<1x8x8xf32> to vector<1x8x8xbf16>
    "tpu.trace_start"() <{level = 10 : i32, message = "bts,bsd->btd"}> : () -> ()
    %cst_26 = arith.constant dense<0.000000e+00> : vector<1x8x8xf32>
    %45 = tpu.matmul %44, %32, %cst_26 {dimension_numbers = #tpu.dot_dimension_numbers<[2], [1], [1], [2], [0, 0, 0, 1, 1, 2], [0], [0]>} : vector<1x8x8xbf16>, vector<1x8x8xbf16>, vector<1x8x8xf32> -> vector<1x8x8xf32>
    "tpu.trace_stop"() : () -> ()
    %c0_27 = arith.constant 0 : index
    %c0_28 = arith.constant 0 : index
    %46 = vector.load %arg19[%c0_27, %c0_28] : memref<8x32xf32, #tpu.memory_space<vmem>>, vector<8x32xf32>
    %47 = vector.shape_cast %45 : vector<1x8x8xf32> to vector<8x8xf32>
    %48 = arith.truncf %47 : vector<8x8xf32> to vector<8x8xbf16>
    %c0_29 = arith.constant 0 : index
    %c0_30 = arith.constant 0 : index
    %c0_31 = arith.constant 0 : index
    %49 = vector.load %arg9[%c0_29, %c0_30, %c0_31] : memref<1x8x32xbf16, #tpu.memory_space<vmem>>, vector<1x8x32xbf16>
    %50 = vector.shape_cast %49 : vector<1x8x32xbf16> to vector<8x32xbf16>
    %cst_32 = arith.constant dense<0.000000e+00> : vector<8x32xf32>
    %51 = tpu.matmul %48, %50, %cst_32 {dimension_numbers = #tpu.dot_dimension_numbers<[1], [0], [0], [1], [0, 0, 1, 1], [], []>} : vector<8x8xbf16>, vector<8x32xbf16>, vector<8x32xf32> -> vector<8x32xf32>
    %52 = arith.addf %46, %51 : vector<8x32xf32>
    %c0_33 = arith.constant 0 : index
    %c0_34 = arith.constant 0 : index
    %53 = vector.load %arg19[%c0_33, %c0_34] : memref<8x32xf32, #tpu.memory_space<vmem>>, vector<8x32xf32>
    tpu.vector_store %arg19[%c0_33, %c0_34], %52 {strides = array<i32>} : memref<8x32xf32, #tpu.memory_space<vmem>>, vector<8x32xf32>,
    %c3_i32 = arith.constant 3 : i32
    %54 = arith.cmpi eq, %arg1, %c3_i32 : i32
    %55 = arith.extui %54 : i1 to i32
    %c0_i32_35 = arith.constant 0 : i32
    %56 = arith.cmpi ne, %55, %c0_i32_35 : i32
    scf.if %56 {
      %c0_36 = arith.constant 0 : index
      %c0_37 = arith.constant 0 : index
      %c0_38 = arith.constant 0 : index
      %57 = vector.load %arg2[%c0_36, %c0_37, %c0_38] : memref<1x8x32xf32, #tpu.memory_space<vmem>>, vector<1x8x32xf32>
      %58 = vector.shape_cast %57 : vector<1x8x32xf32> to vector<8x32xf32>
      %c0_39 = arith.constant 0 : index
      %c0_40 = arith.constant 0 : index
      %59 = vector.load %arg19[%c0_39, %c0_40] : memref<8x32xf32, #tpu.memory_space<vmem>>, vector<8x32xf32>
      %c0_41 = arith.constant 0 : index
      %c0_42 = arith.constant 0 : index
      %60 = vector.load %arg10[%c0_41, %c0_42] : memref<1x32xf32, #tpu.memory_space<vmem>>, vector<1x32xf32>
      %61 = vector.broadcast %60 : vector<1x32xf32> to vector<8x32xf32>
      %62 = arith.addf %59, %61 : vector<8x32xf32>
      %cst_43 = arith.constant dense<0.000000e+00> : vector<8xf32>
      %63 = vector.multi_reduction <add>, %62, %cst_43 [1] : vector<8x32xf32> to vector<8xf32>
      %64 = vector.shape_cast %63 : vector<8xf32> to vector<8x1xf32>
      %cst_44 = arith.constant 3.200000e+01 : f32
      %65 = vector.broadcast %cst_44 : f32 to vector<8x1xf32>
      %66 = arith.divf %64, %65 : vector<8x1xf32>
      %67 = vector.broadcast %66 : vector<8x1xf32> to vector<8x32xf32>
      %68 = arith.subf %62, %67 : vector<8x32xf32>
      %69 = arith.mulf %68, %68 : vector<8x32xf32>
      %cst_45 = arith.constant dense<0.000000e+00> : vector<8xf32>
      %70 = vector.multi_reduction <add>, %69, %cst_45 [1] : vector<8x32xf32> to vector<8xf32>
      %71 = vector.shape_cast %70 : vector<8xf32> to vector<8x1xf32>
      %cst_46 = arith.constant 3.200000e+01 : f32
      %72 = vector.broadcast %cst_46 : f32 to vector<8x1xf32>
      %73 = arith.divf %71, %72 : vector<8x1xf32>
      %74 = vector.broadcast %66 : vector<8x1xf32> to vector<8x32xf32>
      %75 = arith.subf %62, %74 : vector<8x32xf32>
      %cst_47 = arith.constant 9.99999974E-6 : f32
      %76 = vector.broadcast %cst_47 : f32 to vector<8x1xf32>
      %77 = arith.addf %73, %76 : vector<8x1xf32>
      %78 = math.rsqrt %77 : vector<8x1xf32>
      %79 = vector.broadcast %78 : vector<8x1xf32> to vector<8x32xf32>
      %80 = arith.mulf %75, %79 : vector<8x32xf32>
      %c0_48 = arith.constant 0 : index
      %c0_49 = arith.constant 0 : index
      %81 = vector.load %arg11[%c0_48, %c0_49] : memref<1x32xf32, #tpu.memory_space<vmem>>, vector<1x32xf32>
      %82 = vector.broadcast %81 : vector<1x32xf32> to vector<8x32xf32>
      %83 = arith.mulf %80, %82 : vector<8x32xf32>
      %c0_50 = arith.constant 0 : index
      %c0_51 = arith.constant 0 : index
      %84 = vector.load %arg12[%c0_50, %c0_51] : memref<1x32xf32, #tpu.memory_space<vmem>>, vector<1x32xf32>
      %85 = vector.broadcast %84 : vector<1x32xf32> to vector<8x32xf32>
      %86 = arith.addf %83, %85 : vector<8x32xf32>
      %87 = arith.addf %86, %58 : vector<8x32xf32>
      %88 = arith.truncf %87 : vector<8x32xf32> to vector<8x32xbf16>
      %c0_52 = arith.constant 0 : index
      %c0_53 = arith.constant 0 : index
      %89 = vector.load %arg13[%c0_52, %c0_53] : memref<32x128xbf16, #tpu.memory_space<vmem>>, vector<32x128xbf16>
      %cst_54 = arith.constant dense<0.000000e+00> : vector<8x128xf32>
      %90 = tpu.matmul %88, %89, %cst_54 {dimension_numbers = #tpu.dot_dimension_numbers<[1], [0], [0], [1], [0, 0, 1, 1], [], []>} : vector<8x32xbf16>, vector<32x128xbf16>, vector<8x128xf32> -> vector<8x128xf32>
      %c0_55 = arith.constant 0 : index
      %c0_56 = arith.constant 0 : index
      %91 = vector.load %arg14[%c0_55, %c0_56] : memref<1x128xf32, #tpu.memory_space<vmem>>, vector<1x128xf32>
      %92 = vector.broadcast %91 : vector<1x128xf32> to vector<8x128xf32>
      %93 = arith.addf %90, %92 : vector<8x128xf32>
      %94 = arith.mulf %93, %93 : vector<8x128xf32>
      %95 = arith.mulf %94, %93 : vector<8x128xf32>
      %cst_57 = arith.constant 5.000000e-01 : f32
      %96 = vector.broadcast %cst_57 : f32 to vector<8x128xf32>
      %97 = arith.mulf %96, %93 : vector<8x128xf32>
      %cst_58 = arith.constant 4.471500e-02 : f32
      %98 = vector.broadcast %cst_58 : f32 to vector<8x128xf32>
      %99 = arith.mulf %93, %98 : vector<8x128xf32>
      %100 = arith.mulf %99, %95 : vector<8x128xf32>
      %cst_59 = arith.constant 0.797884583 : f32
      %101 = vector.broadcast %cst_59 : f32 to vector<8x128xf32>
      %102 = arith.mulf %101, %100 : vector<8x128xf32>
      %103 = math.tanh %102 : vector<8x128xf32>
      %cst_60 = arith.constant 1.000000e+00 : f32
      %104 = vector.broadcast %cst_60 : f32 to vector<8x128xf32>
      %105 = arith.addf %104, %103 : vector<8x128xf32>
      %106 = arith.mulf %97, %105 : vector<8x128xf32>
      %107 = arith.truncf %106 : vector<8x128xf32> to vector<8x128xbf16>
      %c0_61 = arith.constant 0 : index
      %c0_62 = arith.constant 0 : index
      %108 = vector.load %arg15[%c0_61, %c0_62] : memref<128x32xbf16, #tpu.memory_space<vmem>>, vector<128x32xbf16>
      %cst_63 = arith.constant dense<0.000000e+00> : vector<8x32xf32>
      %109 = tpu.matmul %107, %108, %cst_63 {dimension_numbers = #tpu.dot_dimension_numbers<[1], [0], [0], [1], [0, 0, 1, 1], [], []>} : vector<8x128xbf16>, vector<128x32xbf16>, vector<8x32xf32> -> vector<8x32xf32>
      %c0_64 = arith.constant 0 : index
      %c0_65 = arith.constant 0 : index
      %110 = vector.load %arg16[%c0_64, %c0_65] : memref<1x32xf32, #tpu.memory_space<vmem>>, vector<1x32xf32>
      %111 = vector.broadcast %110 : vector<1x32xf32> to vector<8x32xf32>
      %112 = arith.addf %109, %111 : vector<8x32xf32>
      %113 = arith.addf %112, %87 : vector<8x32xf32>
      %114 = vector.shape_cast %113 : vector<8x32xf32> to vector<1x8x32xf32>
      %c0_66 = arith.constant 0 : index
      %c0_67 = arith.constant 0 : index
      %c0_68 = arith.constant 0 : index
      %115 = vector.load %arg17[%c0_66, %c0_67, %c0_68] : memref<1x8x32xf32, #tpu.memory_space<vmem>>, vector<1x8x32xf32>
      tpu.vector_store %arg17[%c0_66, %c0_67, %c0_68], %114 {strides = array<i32>} : memref<1x8x32xf32, #tpu.memory_space<vmem>>, vector<1x8x32xf32>,
    } else {
    }
    return
  }
  func.func @transform_0(%arg0: i32, %arg1: i32) -> (i32, i32, i32) {
    %c0_i32 = arith.constant 0 : i32
    %c0_i32_0 = arith.constant 0 : i32
    %c0_i32_1 = arith.constant 0 : i32
    return %arg0, %c0_i32, %c0_i32_0 : i32, i32, i32
  }
  func.func @transform_1(%arg0: i32, %arg1: i32) -> (i32, i32, i32) {
    %c0_i32 = arith.constant 0 : i32
    %c0_i32_0 = arith.constant 0 : i32
    %c0_i32_1 = arith.constant 0 : i32
    return %arg1, %c0_i32, %c0_i32_0 : i32, i32, i32
  }
  func.func @transform_2(%arg0: i32, %arg1: i32) -> (i32, i32, i32) {
    %c0_i32 = arith.constant 0 : i32
    %c0_i32_0 = arith.constant 0 : i32
    %c0_i32_1 = arith.constant 0 : i32
    return %arg1, %c0_i32, %c0_i32_0 : i32, i32, i32
  }
  func.func @transform_3(%arg0: i32, %arg1: i32) -> (i32, i32, i32) {
    %c0_i32 = arith.constant 0 : i32
    %c0_i32_0 = arith.constant 0 : i32
    %c0_i32_1 = arith.constant 0 : i32
    return %arg1, %c0_i32, %c0_i32_0 : i32, i32, i32
  }
  func.func @transform_4(%arg0: i32, %arg1: i32) -> (i32, i32, i32) {
    %c0_i32 = arith.constant 0 : i32
    %c0_i32_0 = arith.constant 0 : i32
    %c0_i32_1 = arith.constant 0 : i32
    return %arg1, %c0_i32, %c0_i32_0 : i32, i32, i32
  }
  func.func @transform_5(%arg0: i32, %arg1: i32) -> (i32, i32, i32) {
    %c0_i32 = arith.constant 0 : i32
    %c0_i32_0 = arith.constant 0 : i32
    %c0_i32_1 = arith.constant 0 : i32
    return %arg1, %c0_i32, %c0_i32_0 : i32, i32, i32
  }
  func.func @transform_6(%arg0: i32, %arg1: i32) -> (i32, i32, i32) {
    %c0_i32 = arith.constant 0 : i32
    %c0_i32_0 = arith.constant 0 : i32
    %c0_i32_1 = arith.constant 0 : i32
    return %arg1, %c0_i32, %c0_i32_0 : i32, i32, i32
  }
  func.func @transform_7(%arg0: i32, %arg1: i32) -> (i32, i32, i32) {
    %c0_i32 = arith.constant 0 : i32
    %c0_i32_0 = arith.constant 0 : i32
    %c0_i32_1 = arith.constant 0 : i32
    return %arg1, %c0_i32, %c0_i32_0 : i32, i32, i32
  }
  func.func @transform_8(%arg0: i32, %arg1: i32) -> (i32, i32) {
    %c0_i32 = arith.constant 0 : i32
    %c0_i32_0 = arith.constant 0 : i32
    %c0_i32_1 = arith.constant 0 : i32
    return %c0_i32, %c0_i32_0 : i32, i32
  }
  func.func @transform_9(%arg0: i32, %arg1: i32) -> (i32, i32) {
    %c0_i32 = arith.constant 0 : i32
    %c0_i32_0 = arith.constant 0 : i32
    %c0_i32_1 = arith.constant 0 : i32
    return %c0_i32, %c0_i32_0 : i32, i32
  }
  func.func @transform_10(%arg0: i32, %arg1: i32) -> (i32, i32) {
    %c0_i32 = arith.constant 0 : i32
    %c0_i32_0 = arith.constant 0 : i32
    %c0_i32_1 = arith.constant 0 : i32
    return %c0_i32, %c0_i32_0 : i32, i32
  }
  func.func @transform_11(%arg0: i32, %arg1: i32) -> (i32, i32) {
    %c0_i32 = arith.constant 0 : i32
    %c0_i32_0 = arith.constant 0 : i32
    %c0_i32_1 = arith.constant 0 : i32
    return %c0_i32, %c0_i32_0 : i32, i32
  }
  func.func @transform_12(%arg0: i32, %arg1: i32) -> (i32, i32) {
    %c0_i32 = arith.constant 0 : i32
    %c0_i32_0 = arith.constant 0 : i32
    %c0_i32_1 = arith.constant 0 : i32
    return %c0_i32, %c0_i32_0 : i32, i32
  }
  func.func @transform_13(%arg0: i32, %arg1: i32) -> (i32, i32) {
    %c0_i32 = arith.constant 0 : i32
    %c0_i32_0 = arith.constant 0 : i32
    %c0_i32_1 = arith.constant 0 : i32
    return %c0_i32, %c0_i32_0 : i32, i32
  }
  func.func @transform_14(%arg0: i32, %arg1: i32) -> (i32, i32) {
    %c0_i32 = arith.constant 0 : i32
    %c0_i32_0 = arith.constant 0 : i32
    %c0_i32_1 = arith.constant 0 : i32
    return %c0_i32, %c0_i32_0 : i32, i32
  }
  func.func @transform_15(%arg0: i32, %arg1: i32) -> (i32, i32, i32) {
    %c0_i32 = arith.constant 0 : i32
    %c0_i32_0 = arith.constant 0 : i32
    %c0_i32_1 = arith.constant 0 : i32
    return %arg0, %c0_i32, %c0_i32_0 : i32, i32, i32
  }
}

</mosaic_0001>

<llo_original>
// kernel: tpu_custom_call.1
$region0: #{tpu_custom_call.1}
  #allocation0 [shape = 'u32[]', space=smem, size = 0x4, offset = 0x4, fixed_abs, tag = 'smem constant byte address 0x4 - core index']
  #allocation1 [shape = 'u32[72,128]{1,0:T(1,128)}', space=vmem, size = 0x9000, scoped, tag = 'internal scratch']
  #allocation2 [shape = 'bf16[8,32]{1,0:T(8,128)(2,1)}', space=vmem, size = 0x800, scoped, tag = 'scratch operand']
  #allocation3 [shape = 'f32[8,32]{1,0:T(8,128)}', space=vmem, size = 0x1000, scoped, tag = 'scratch operand']
  %s0 = inlined_call_operand.vmem [shape: f32[2,8,32], index: 0, kind: input, shape index: {}]
  %s1 = inlined_call_operand.vmem [shape: bf16[4,32,8], index: 1, kind: input, shape index: {}]
  %s2 = inlined_call_operand.vmem [shape: bf16[4,32,8], index: 2, kind: input, shape index: {}]
  %s3 = inlined_call_operand.vmem [shape: bf16[4,32,8], index: 3, kind: input, shape index: {}]
  %s4 = inlined_call_operand.vmem [shape: f32[4,1,8], index: 4, kind: input, shape index: {}]
  %s5 = inlined_call_operand.vmem [shape: f32[4,1,8], index: 5, kind: input, shape index: {}]
  %s6 = inlined_call_operand.vmem [shape: f32[4,1,8], index: 6, kind: input, shape index: {}]
  %s7 = inlined_call_operand.vmem [shape: bf16[4,8,32], index: 7, kind: input, shape index: {}]
  %s8 = inlined_call_operand.vmem [shape: f32[1,32], index: 8, kind: input, shape index: {}]
  %s9 = inlined_call_operand.vmem [shape: f32[1,32], index: 9, kind: input, shape index: {}]
  %s10 = inlined_call_operand.vmem [shape: f32[1,32], index: 10, kind: input, shape index: {}]
  %s11 = inlined_call_operand.vmem [shape: bf16[32,128], index: 11, kind: input, shape index: {}]
  %s12 = inlined_call_operand.vmem [shape: f32[1,128], index: 12, kind: input, shape index: {}]
  %s13 = inlined_call_operand.vmem [shape: bf16[128,32], index: 13, kind: input, shape index: {}]
  %s14 = inlined_call_operand.vmem [shape: f32[1,32], index: 14, kind: input, shape index: {}]
  %s15 = inlined_call_operand.hbm [shape: f32[2,8,32], index: 15, kind: output, shape index: {}]
  %s16 = sld [smem:[#allocation0]]
  $region101: #{tpu_custom_call.1} parent=0
    _
  %s18 = ssub.s32 1, %s16
  %s19 = scalar_select 0, %s18, %s16
  $region1: #{tpu_custom_call.1} parent=0
    #allocation4 [shape = 'u8[8192]{0}', space=vmem, size = 0x2000, scoped, tag = 'output window, operand 0']
    #allocation5 [shape = 's32[2]{0}', space=sflag, size = 0x8, scoped, tag = 'scoped memory for tpu_custom_call.1']
    %20 = vsyncpa [#allocation5], 0
    %s21 = scalar_lea.sflag [#allocation5], 1
    %22 = vsyncpa %s21, 0
    loop: start=0, step=1, limit=10
    $region2: #{tpu_custom_call.1} parent=1 // loop_pre_header
      _
    $region3: #{tpu_custom_call.1} parent=1 // loop_header
      %s24 = sphi 0, %s28
      %p25 = scmp.ge.s32.totalorder %s24, 10
      %s31 = sphi 0, %s43
      %s32 = sphi 0, %s39
      %s33 = sphi 0, %s31
      %s34 = sphi 0, %s32
      %s35 = sphi 0, %s33
      %s36 = sphi 0, %s34
      %s46 = sphi 0, %s48
      %s49 = sphi 0, %s46
      %s50 = sphi 0, %s49
      %s66 = sphi 0, %s50
      %s72 = sphi 0, %s74
      %s75 = sphi 0, %s72
      %s76 = sphi 0, %s75
      %s92 = sphi 0, %s76
      %s98 = sphi 0, %s100
      %s101 = sphi 0, %s98
      %s102 = sphi 0, %s101
      %s118 = sphi 0, %s102
      %s124 = sphi 0, %s126
      %s127 = sphi 0, %s124
      %s128 = sphi 0, %s127
      %s144 = sphi 0, %s128
      %s150 = sphi 0, %s152
      %s153 = sphi 0, %s150
      %s154 = sphi 0, %s153
      %s170 = sphi 0, %s154
      %s176 = sphi 0, %s178
      %s179 = sphi 0, %s176
      %s180 = sphi 0, %s179
      %s196 = sphi 0, %s180
      %s202 = sphi 0, %s204
      %s205 = sphi 0, %s202
      %s206 = sphi 0, %s205
      %s222 = sphi 0, %s206
      %s228 = sphi 0, %s230
      %s231 = sphi 0, %s228
      %s232 = sphi 0, %s231
      %s248 = sphi 0, %s232
      %s252 = sphi 0, %s252
      %s254 = sphi 0, %s252
      %s255 = sphi 0, %s254
      %s269 = sphi 0, %s255
      %s273 = sphi 0, %s273
      %s275 = sphi 0, %s273
      %s276 = sphi 0, %s275
      %s290 = sphi 0, %s276
      %s294 = sphi 0, %s294
      %s296 = sphi 0, %s294
      %s297 = sphi 0, %s296
      %s311 = sphi 0, %s297
      %s315 = sphi 0, %s315
      %s317 = sphi 0, %s315
      %s318 = sphi 0, %s317
      %s332 = sphi 0, %s318
      %s336 = sphi 0, %s336
      %s338 = sphi 0, %s336
      %s339 = sphi 0, %s338
      %s353 = sphi 0, %s339
      %s357 = sphi 0, %s357
      %s359 = sphi 0, %s357
      %s360 = sphi 0, %s359
      %s374 = sphi 0, %s360
      %s378 = sphi 0, %s378
      %s380 = sphi 0, %s378
      %s381 = sphi 0, %s380
      %s395 = sphi 0, %s381
      %s401 = sphi 0, %s403
      %s404 = sphi 0, %s401
      %s405 = sphi 0, %s404
      %s421 = sphi 0, %s405
    $region4: #{tpu_custom_call.1} parent=1 // loop_header_branch
      %27 = sbr.rel (%p25) target = $region8
    $region5: #{tpu_custom_call.1} parent=1 // loop_body
      %s29 = ssub.s32 %s24, 1
      %s30 = ssub.s32 %s24, 2
      %s37 = sadd.s32 1, %s32
      %p38 = scmp.ge.s32.totalorder %s37, 4
      %s39 = scalar_select %p38, 0, %s37
      %s40 = sadd.s32 1, %s31
      %s41 = scalar_select %p38, %s40, %s31
      %p42 = scmp.ge.s32.totalorder %s41, 2
      %s43 = scalar_select %p42, 0, %s41
      %s44 = ssub.s32 %s31, %s43
      %p45 = scmp.eq.s32.totalorder %s44, 0
      %s47 = sadd.s32 %s46, 1
      %s48 = scalar_select %p45, %s46, %s47
      %p51 = pneg %p45
      %p52 = scmp.eq.s32.totalorder %s24, 7
      %p53 = por %p51, %p52
      %p54 = scmp.ne.s32.totalorder %s46, %s49
      %p55 = scmp.eq.s32.totalorder %s24, 0
      %p56 = por %p54, %p55
      %p57 = scmp.ne.s32.totalorder %s46, %s49
      %p58 = scmp.eq.s32.totalorder %s29, 7
      %p59 = por %p57, %p58
      %p60 = scmp.ne.s32.totalorder %s49, %s50
      %p61 = scmp.eq.s32.totalorder %s29, 0
      %p62 = por %p60, %p61
      %p63 = scmp.ne.s32.totalorder %s49, %s50
      %p64 = scmp.eq.s32.totalorder %s30, 7
      %p65 = por %p63, %p64
      %p67 = scmp.ne.s32.totalorder %s50, %s66
      %p68 = scmp.eq.s32.totalorder %s30, 0
      %p69 = por %p67, %p68
      %s70 = ssub.s32 %s32, %s39
      %p71 = scmp.eq.s32.totalorder %s70, 0
      %s73 = sadd.s32 %s72, 1
      %s74 = scalar_select %p71, %s72, %s73
      %p77 = pneg %p71
      %p78 = scmp.eq.s32.totalorder %s24, 7
      %p79 = por %p77, %p78
      %p80 = scmp.ne.s32.totalorder %s72, %s75
      %p81 = scmp.eq.s32.totalorder %s24, 0
      %p82 = por %p80, %p81
      %p83 = scmp.ne.s32.totalorder %s72, %s75
      %p84 = scmp.eq.s32.totalorder %s29, 7
      %p85 = por %p83, %p84
      %p86 = scmp.ne.s32.totalorder %s75, %s76
      %p87 = scmp.eq.s32.totalorder %s29, 0
      %p88 = por %p86, %p87
      %p89 = scmp.ne.s32.totalorder %s75, %s76
      %p90 = scmp.eq.s32.totalorder %s30, 7
      %p91 = por %p89, %p90
      %p93 = scmp.ne.s32.totalorder %s76, %s92
      %p94 = scmp.eq.s32.totalorder %s30, 0
      %p95 = por %p93, %p94
      %s96 = ssub.s32 %s32, %s39
      %p97 = scmp.eq.s32.totalorder %s96, 0
      %s99 = sadd.s32 %s98, 1
      %s100 = scalar_select %p97, %s98, %s99
      %p103 = pneg %p97
      %p104 = scmp.eq.s32.totalorder %s24, 7
      %p105 = por %p103, %p104
      %p106 = scmp.ne.s32.totalorder %s98, %s101
      %p107 = scmp.eq.s32.totalorder %s24, 0
      %p108 = por %p106, %p107
      %p109 = scmp.ne.s32.totalorder %s98, %s101
      %p110 = scmp.eq.s32.totalorder %s29, 7
      %p111 = por %p109, %p110
      %p112 = scmp.ne.s32.totalorder %s101, %s102
      %p113 = scmp.eq.s32.totalorder %s29, 0
      %p114 = por %p112, %p113
      %p115 = scmp.ne.s32.totalorder %s101, %s102
      %p116 = scmp.eq.s32.totalorder %s30, 7
      %p117 = por %p115, %p116
      %p119 = scmp.ne.s32.totalorder %s102, %s118
      %p120 = scmp.eq.s32.totalorder %s30, 0
      %p121 = por %p119, %p120
      %s122 = ssub.s32 %s32, %s39
      %p123 = scmp.eq.s32.totalorder %s122, 0
      %s125 = sadd.s32 %s124, 1
      %s126 = scalar_select %p123, %s124, %s125
      %p129 = pneg %p123
      %p130 = scmp.eq.s32.totalorder %s24, 7
      %p131 = por %p129, %p130
      %p132 = scmp.ne.s32.totalorder %s124, %s127
      %p133 = scmp.eq.s32.totalorder %s24, 0
      %p134 = por %p132, %p133
      %p135 = scmp.ne.s32.totalorder %s124, %s127
      %p136 = scmp.eq.s32.totalorder %s29, 7
      %p137 = por %p135, %p136
      %p138 = scmp.ne.s32.totalorder %s127, %s128
      %p139 = scmp.eq.s32.totalorder %s29, 0
      %p140 = por %p138, %p139
      %p141 = scmp.ne.s32.totalorder %s127, %s128
      %p142 = scmp.eq.s32.totalorder %s30, 7
      %p143 = por %p141, %p142
      %p145 = scmp.ne.s32.totalorder %s128, %s144
      %p146 = scmp.eq.s32.totalorder %s30, 0
      %p147 = por %p145, %p146
      %s148 = ssub.s32 %s32, %s39
      %p149 = scmp.eq.s32.totalorder %s148, 0
      %s151 = sadd.s32 %s150, 1
      %s152 = scalar_select %p149, %s150, %s151
      %p155 = pneg %p149
      %p156 = scmp.eq.s32.totalorder %s24, 7
      %p157 = por %p155, %p156
      %p158 = scmp.ne.s32.totalorder %s150, %s153
      %p159 = scmp.eq.s32.totalorder %s24, 0
      %p160 = por %p158, %p159
      %p161 = scmp.ne.s32.totalorder %s150, %s153
      %p162 = scmp.eq.s32.totalorder %s29, 7
      %p163 = por %p161, %p162
      %p164 = scmp.ne.s32.totalorder %s153, %s154
      %p165 = scmp.eq.s32.totalorder %s29, 0
      %p166 = por %p164, %p165
      %p167 = scmp.ne.s32.totalorder %s153, %s154
      %p168 = scmp.eq.s32.totalorder %s30, 7
      %p169 = por %p167, %p168
      %p171 = scmp.ne.s32.totalorder %s154, %s170
      %p172 = scmp.eq.s32.totalorder %s30, 0
      %p173 = por %p171, %p172
      %s174 = ssub.s32 %s32, %s39
      %p175 = scmp.eq.s32.totalorder %s174, 0
      %s177 = sadd.s32 %s176, 1
      %s178 = scalar_select %p175, %s176, %s177
      %p181 = pneg %p175
      %p182 = scmp.eq.s32.totalorder %s24, 7
      %p183 = por %p181, %p182
      %p184 = scmp.ne.s32.totalorder %s176, %s179
      %p185 = scmp.eq.s32.totalorder %s24, 0
      %p186 = por %p184, %p185
      %p187 = scmp.ne.s32.totalorder %s176, %s179
      %p188 = scmp.eq.s32.totalorder %s29, 7
      %p189 = por %p187, %p188
      %p190 = scmp.ne.s32.totalorder %s179, %s180
      %p191 = scmp.eq.s32.totalorder %s29, 0
      %p192 = por %p190, %p191
      %p193 = scmp.ne.s32.totalorder %s179, %s180
      %p194 = scmp.eq.s32.totalorder %s30, 7
      %p195 = por %p193, %p194
      %p197 = scmp.ne.s32.totalorder %s180, %s196
      %p198 = scmp.eq.s32.totalorder %s30, 0
      %p199 = por %p197, %p198
      %s200 = ssub.s32 %s32, %s39
      %p201 = scmp.eq.s32.totalorder %s200, 0
      %s203 = sadd.s32 %s202, 1
      %s204 = scalar_select %p201, %s202, %s203
      %p207 = pneg %p201
      %p208 = scmp.eq.s32.totalorder %s24, 7
      %p209 = por %p207, %p208
      %p210 = scmp.ne.s32.totalorder %s202, %s205
      %p211 = scmp.eq.s32.totalorder %s24, 0
      %p212 = por %p210, %p211
      %p213 = scmp.ne.s32.totalorder %s202, %s205
      %p214 = scmp.eq.s32.totalorder %s29, 7
      %p215 = por %p213, %p214
      %p216 = scmp.ne.s32.totalorder %s205, %s206
      %p217 = scmp.eq.s32.totalorder %s29, 0
      %p218 = por %p216, %p217
      %p219 = scmp.ne.s32.totalorder %s205, %s206
      %p220 = scmp.eq.s32.totalorder %s30, 7
      %p221 = por %p219, %p220
      %p223 = scmp.ne.s32.totalorder %s206, %s222
      %p224 = scmp.eq.s32.totalorder %s30, 0
      %p225 = por %p223, %p224
      %s226 = ssub.s32 %s32, %s39
      %p227 = scmp.eq.s32.totalorder %s226, 0
      %s229 = sadd.s32 %s228, 1
      %s230 = scalar_select %p227, %s228, %s229
      %p233 = pneg %p227
      %p234 = scmp.eq.s32.totalorder %s24, 7
      %p235 = por %p233, %p234
      %p236 = scmp.ne.s32.totalorder %s228, %s231
      %p237 = scmp.eq.s32.totalorder %s24, 0
      %p238 = por %p236, %p237
      %p239 = scmp.ne.s32.totalorder %s228, %s231
      %p240 = scmp.eq.s32.totalorder %s29, 7
      %p241 = por %p239, %p240
      %p242 = scmp.ne.s32.totalorder %s231, %s232
      %p243 = scmp.eq.s32.totalorder %s29, 0
      %p244 = por %p242, %p243
      %p245 = scmp.ne.s32.totalorder %s231, %s232
      %p246 = scmp.eq.s32.totalorder %s30, 7
      %p247 = por %p245, %p246
      %p249 = scmp.ne.s32.totalorder %s232, %s248
      %p250 = scmp.eq.s32.totalorder %s30, 0
      %p251 = por %p249, %p250
      %s253 = sadd.s32 %s252, 1
      %p256 = scmp.eq.s32.totalorder %s24, 7
      %p257 = scmp.ne.s32.totalorder %s252, %s254
      %p258 = scmp.eq.s32.totalorder %s24, 0
      %p259 = por %p257, %p258
      %p260 = scmp.ne.s32.totalorder %s252, %s254
      %p261 = scmp.eq.s32.totalorder %s29, 7
      %p262 = por %p260, %p261
      %p263 = scmp.ne.s32.totalorder %s254, %s255
      %p264 = scmp.eq.s32.totalorder %s29, 0
      %p265 = por %p263, %p264
      %p266 = scmp.ne.s32.totalorder %s254, %s255
      %p267 = scmp.eq.s32.totalorder %s30, 7
      %p268 = por %p266, %p267
      %p270 = scmp.ne.s32.totalorder %s255, %s269
      %p271 = scmp.eq.s32.totalorder %s30, 0
      %p272 = por %p270, %p271
      %s274 = sadd.s32 %s273, 1
      %p277 = scmp.eq.s32.totalorder %s24, 7
      %p278 = scmp.ne.s32.totalorder %s273, %s275
      %p279 = scmp.eq.s32.totalorder %s24, 0
      %p280 = por %p278, %p279
      %p281 = scmp.ne.s32.totalorder %s273, %s275
      %p282 = scmp.eq.s32.totalorder %s29, 7
      %p283 = por %p281, %p282
      %p284 = scmp.ne.s32.totalorder %s275, %s276
      %p285 = scmp.eq.s32.totalorder %s29, 0
      %p286 = por %p284, %p285
      %p287 = scmp.ne.s32.totalorder %s275, %s276
      %p288 = scmp.eq.s32.totalorder %s30, 7
      %p289 = por %p287, %p288
      %p291 = scmp.ne.s32.totalorder %s276, %s290
      %p292 = scmp.eq.s32.totalorder %s30, 0
      %p293 = por %p291, %p292
      %s295 = sadd.s32 %s294, 1
      %p298 = scmp.eq.s32.totalorder %s24, 7
      %p299 = scmp.ne.s32.totalorder %s294, %s296
      %p300 = scmp.eq.s32.totalorder %s24, 0
      %p301 = por %p299, %p300
      %p302 = scmp.ne.s32.totalorder %s294, %s296
      %p303 = scmp.eq.s32.totalorder %s29, 7
      %p304 = por %p302, %p303
      %p305 = scmp.ne.s32.totalorder %s296, %s297
      %p306 = scmp.eq.s32.totalorder %s29, 0
      %p307 = por %p305, %p306
      %p308 = scmp.ne.s32.totalorder %s296, %s297
      %p309 = scmp.eq.s32.totalorder %s30, 7
      %p310 = por %p308, %p309
      %p312 = scmp.ne.s32.totalorder %s297, %s311
      %p313 = scmp.eq.s32.totalorder %s30, 0
      %p314 = por %p312, %p313
      %s316 = sadd.s32 %s315, 1
      %p319 = scmp.eq.s32.totalorder %s24, 7
      %p320 = scmp.ne.s32.totalorder %s315, %s317
      %p321 = scmp.eq.s32.totalorder %s24, 0
      %p322 = por %p320, %p321
      %p323 = scmp.ne.s32.totalorder %s315, %s317
      %p324 = scmp.eq.s32.totalorder %s29, 7
      %p325 = por %p323, %p324
      %p326 = scmp.ne.s32.totalorder %s317, %s318
      %p327 = scmp.eq.s32.totalorder %s29, 0
      %p328 = por %p326, %p327
      %p329 = scmp.ne.s32.totalorder %s317, %s318
      %p330 = scmp.eq.s32.totalorder %s30, 7
      %p331 = por %p329, %p330
      %p333 = scmp.ne.s32.totalorder %s318, %s332
      %p334 = scmp.eq.s32.totalorder %s30, 0
      %p335 = por %p333, %p334
      %s337 = sadd.s32 %s336, 1
      %p340 = scmp.eq.s32.totalorder %s24, 7
      %p341 = scmp.ne.s32.totalorder %s336, %s338
      %p342 = scmp.eq.s32.totalorder %s24, 0
      %p343 = por %p341, %p342
      %p344 = scmp.ne.s32.totalorder %s336, %s338
      %p345 = scmp.eq.s32.totalorder %s29, 7
      %p346 = por %p344, %p345
      %p347 = scmp.ne.s32.totalorder %s338, %s339
      %p348 = scmp.eq.s32.totalorder %s29, 0
      %p349 = por %p347, %p348
      %p350 = scmp.ne.s32.totalorder %s338, %s339
      %p351 = scmp.eq.s32.totalorder %s30, 7
      %p352 = por %p350, %p351
      %p354 = scmp.ne.s32.totalorder %s339, %s353
      %p355 = scmp.eq.s32.totalorder %s30, 0
      %p356 = por %p354, %p355
      %s358 = sadd.s32 %s357, 1
      %p361 = scmp.eq.s32.totalorder %s24, 7
      %p362 = scmp.ne.s32.totalorder %s357, %s359
      %p363 = scmp.eq.s32.totalorder %s24, 0
      %p364 = por %p362, %p363
      %p365 = scmp.ne.s32.totalorder %s357, %s359
      %p366 = scmp.eq.s32.totalorder %s29, 7
      %p367 = por %p365, %p366
      %p368 = scmp.ne.s32.totalorder %s359, %s360
      %p369 = scmp.eq.s32.totalorder %s29, 0
      %p370 = por %p368, %p369
      %p371 = scmp.ne.s32.totalorder %s359, %s360
      %p372 = scmp.eq.s32.totalorder %s30, 7
      %p373 = por %p371, %p372
      %p375 = scmp.ne.s32.totalorder %s360, %s374
      %p376 = scmp.eq.s32.totalorder %s30, 0
      %p377 = por %p375, %p376
      %s379 = sadd.s32 %s378, 1
      %p382 = scmp.eq.s32.totalorder %s24, 7
      %p383 = scmp.ne.s32.totalorder %s378, %s380
      %p384 = scmp.eq.s32.totalorder %s24, 0
      %p385 = por %p383, %p384
      %p386 = scmp.ne.s32.totalorder %s378, %s380
      %p387 = scmp.eq.s32.totalorder %s29, 7
      %p388 = por %p386, %p387
      %p389 = scmp.ne.s32.totalorder %s380, %s381
      %p390 = scmp.eq.s32.totalorder %s29, 0
      %p391 = por %p389, %p390
      %p392 = scmp.ne.s32.totalorder %s380, %s381
      %p393 = scmp.eq.s32.totalorder %s30, 7
      %p394 = por %p392, %p393
      %p396 = scmp.ne.s32.totalorder %s381, %s395
      %p397 = scmp.eq.s32.totalorder %s30, 0
      %p398 = por %p396, %p397
      %s399 = ssub.s32 %s31, %s43
      %p400 = scmp.eq.s32.totalorder %s399, 0
      %s402 = sadd.s32 %s401, 1
      %s403 = scalar_select %p400, %s401, %s402
      %p406 = pneg %p400
      %p407 = scmp.eq.s32.totalorder %s24, 7
      %p408 = por %p406, %p407
      %p409 = scmp.ne.s32.totalorder %s401, %s404
      %p410 = scmp.eq.s32.totalorder %s24, 0
      %p411 = por %p409, %p410
      %p412 = scmp.ne.s32.totalorder %s401, %s404
      %p413 = scmp.eq.s32.totalorder %s29, 7
      %p414 = por %p412, %p413
      %p415 = scmp.ne.s32.totalorder %s404, %s405
      %p416 = scmp.eq.s32.totalorder %s29, 0
      %p417 = por %p415, %p416
      %p418 = scmp.ne.s32.totalorder %s404, %s405
      %p419 = scmp.eq.s32.totalorder %s30, 7
      %p420 = por %p418, %p419
      %p422 = scmp.ne.s32.totalorder %s405, %s421
      %p423 = scmp.eq.s32.totalorder %s30, 0
      %p424 = por %p422, %p423
      %p425 = scmp.le.s32.totalorder 1, %s24
      %p426 = scmp.lt.s32.totalorder %s24, 9
      %p427 = pnand %p425, %p426
      %p428 = pneg %p427
      // Predicated region
      $region9: #{tpu_custom_call.1} parent=5 // pred_check
        _
      $region10: #{tpu_custom_call.1} parent=5 // pred_check_branch
        %430 = sbr.rel (%p427) target = $region12
      $region11: #{tpu_custom_call.1} parent=5 // pred_region
        %s431 = ssub.s32 %s24, 1
        // Predicated region
        $region13: #{tpu_custom_call.1} parent=11 // pred_check
          %p432 = pneg %p265
        $region14: #{tpu_custom_call.1} parent=11 // pred_check_branch
          %434 = sbr.rel (%p432) target = $region16
        $region15: #{tpu_custom_call.1} parent=11 // pred_region
          _
        $region16: #{tpu_custom_call.1} parent=11 // pred_fallthru
          _
        // Predicated region
        $region17: #{tpu_custom_call.1} parent=11 // pred_check
          %p435 = pneg %p286
        $region18: #{tpu_custom_call.1} parent=11 // pred_check_branch
          %437 = sbr.rel (%p435) target = $region20
        $region19: #{tpu_custom_call.1} parent=11 // pred_region
          _
        $region20: #{tpu_custom_call.1} parent=11 // pred_fallthru
          _
        // Predicated region
        $region21: #{tpu_custom_call.1} parent=11 // pred_check
          %p438 = pneg %p307
        $region22: #{tpu_custom_call.1} parent=11 // pred_check_branch
          %440 = sbr.rel (%p438) target = $region24
        $region23: #{tpu_custom_call.1} parent=11 // pred_region
          _
        $region24: #{tpu_custom_call.1} parent=11 // pred_fallthru
          _
        // Predicated region
        $region25: #{tpu_custom_call.1} parent=11 // pred_check
          %p441 = pneg %p328
        $region26: #{tpu_custom_call.1} parent=11 // pred_check_branch
          %443 = sbr.rel (%p441) target = $region28
        $region27: #{tpu_custom_call.1} parent=11 // pred_region
          _
        $region28: #{tpu_custom_call.1} parent=11 // pred_fallthru
          _
        // Predicated region
        $region29: #{tpu_custom_call.1} parent=11 // pred_check
          %p444 = pneg %p349
        $region30: #{tpu_custom_call.1} parent=11 // pred_check_branch
          %446 = sbr.rel (%p444) target = $region32
        $region31: #{tpu_custom_call.1} parent=11 // pred_region
          _
        $region32: #{tpu_custom_call.1} parent=11 // pred_fallthru
          _
        // Predicated region
        $region33: #{tpu_custom_call.1} parent=11 // pred_check
          %p447 = pneg %p370
        $region34: #{tpu_custom_call.1} parent=11 // pred_check_branch
          %449 = sbr.rel (%p447) target = $region36
        $region35: #{tpu_custom_call.1} parent=11 // pred_region
          _
        $region36: #{tpu_custom_call.1} parent=11 // pred_fallthru
          _
        // Predicated region
        $region37: #{tpu_custom_call.1} parent=11 // pred_check
          %p450 = pneg %p391
        $region38: #{tpu_custom_call.1} parent=11 // pred_check_branch
          %452 = sbr.rel (%p450) target = $region40
        $region39: #{tpu_custom_call.1} parent=11 // pred_region
          _
        $region40: #{tpu_custom_call.1} parent=11 // pred_fallthru
          _
      $region12: #{tpu_custom_call.1} parent=5 // pred_fallthru
        _
      %p453 = scmp.lt.s32.totalorder %s24, 8
      // Predicated region
      $region41: #{tpu_custom_call.1} parent=5 // pred_check
        %p454 = pneg %p453
      $region42: #{tpu_custom_call.1} parent=5 // pred_check_branch
        %456 = sbr.rel (%p454) target = $region44
      $region43: #{tpu_custom_call.1} parent=5 // pred_region
        // Predicated region
        $region45: #{tpu_custom_call.1} parent=43 // pred_check
          %p457 = pneg %p56
        $region46: #{tpu_custom_call.1} parent=43 // pred_check_branch
          %459 = sbr.rel (%p457) target = $region48
        $region47: #{tpu_custom_call.1} parent=43 // pred_region
          %p460 = scmp.lt.s32.totalorder %s31, 1
          %s461 = scalar_select %p460, %s31, 1
          %s462 = smul.addr %s461, 8
          %s463 = scalar_lea.vmem %s0, %s462
        $region48: #{tpu_custom_call.1} parent=43 // pred_fallthru
          _
        // Predicated region
        $region49: #{tpu_custom_call.1} parent=43 // pred_check
          %p464 = pneg %p82
        $region50: #{tpu_custom_call.1} parent=43 // pred_check_branch
          %466 = sbr.rel (%p464) target = $region52
        $region51: #{tpu_custom_call.1} parent=43 // pred_region
          %p467 = scmp.lt.s32.totalorder %s32, 3
          %s468 = scalar_select %p467, %s32, 3
          %s469 = smul.addr %s468, 4
          %s470 = smul.addr %s469, 4
          %s471 = scalar_lea.vmem %s1, %s470
        $region52: #{tpu_custom_call.1} parent=43 // pred_fallthru
          _
        // Predicated region
        $region53: #{tpu_custom_call.1} parent=43 // pred_check
          %p472 = pneg %p108
        $region54: #{tpu_custom_call.1} parent=43 // pred_check_branch
          %474 = sbr.rel (%p472) target = $region56
        $region55: #{tpu_custom_call.1} parent=43 // pred_region
          %p475 = scmp.lt.s32.totalorder %s32, 3
          %s476 = scalar_select %p475, %s32, 3
          %s477 = smul.addr %s476, 4
          %s478 = smul.addr %s477, 4
          %s479 = scalar_lea.vmem %s2, %s478
        $region56: #{tpu_custom_call.1} parent=43 // pred_fallthru
          _
        // Predicated region
        $region57: #{tpu_custom_call.1} parent=43 // pred_check
          %p480 = pneg %p134
        $region58: #{tpu_custom_call.1} parent=43 // pred_check_branch
          %482 = sbr.rel (%p480) target = $region60
        $region59: #{tpu_custom_call.1} parent=43 // pred_region
          %p483 = scmp.lt.s32.totalorder %s32, 3
          %s484 = scalar_select %p483, %s32, 3
          %s485 = smul.addr %s484, 4
          %s486 = smul.addr %s485, 4
          %s487 = scalar_lea.vmem %s3, %s486
        $region60: #{tpu_custom_call.1} parent=43 // pred_fallthru
          _
        // Predicated region
        $region61: #{tpu_custom_call.1} parent=43 // pred_check
          %p488 = pneg %p160
        $region62: #{tpu_custom_call.1} parent=43 // pred_check_branch
          %490 = sbr.rel (%p488) target = $region64
        $region63: #{tpu_custom_call.1} parent=43 // pred_region
          %p491 = scmp.lt.s32.totalorder %s32, 3
          %s492 = scalar_select %p491, %s32, 3
          %s493 = scalar_lea.vmem %s4, %s492
        $region64: #{tpu_custom_call.1} parent=43 // pred_fallthru
          _
        // Predicated region
        $region65: #{tpu_custom_call.1} parent=43 // pred_check
          %p494 = pneg %p186
        $region66: #{tpu_custom_call.1} parent=43 // pred_check_branch
          %496 = sbr.rel (%p494) target = $region68
        $region67: #{tpu_custom_call.1} parent=43 // pred_region
          %p497 = scmp.lt.s32.totalorder %s32, 3
          %s498 = scalar_select %p497, %s32, 3
          %s499 = scalar_lea.vmem %s5, %s498
        $region68: #{tpu_custom_call.1} parent=43 // pred_fallthru
          _
        // Predicated region
        $region69: #{tpu_custom_call.1} parent=43 // pred_check
          %p500 = pneg %p212
        $region70: #{tpu_custom_call.1} parent=43 // pred_check_branch
          %502 = sbr.rel (%p500) target = $region72
        $region71: #{tpu_custom_call.1} parent=43 // pred_region
          %p503 = scmp.lt.s32.totalorder %s32, 3
          %s504 = scalar_select %p503, %s32, 3
          %s505 = scalar_lea.vmem %s6, %s504
        $region72: #{tpu_custom_call.1} parent=43 // pred_fallthru
          _
        // Predicated region
        $region73: #{tpu_custom_call.1} parent=43 // pred_check
          %p506 = pneg %p238
        $region74: #{tpu_custom_call.1} parent=43 // pred_check_branch
          %508 = sbr.rel (%p506) target = $region76
        $region75: #{tpu_custom_call.1} parent=43 // pred_region
          %p509 = scmp.lt.s32.totalorder %s32, 3
          %s510 = scalar_select %p509, %s32, 3
          %s511 = smul.addr %s510, 4
          %s512 = scalar_lea.vmem %s7, %s511
        $region76: #{tpu_custom_call.1} parent=43 // pred_fallthru
          _
      $region44: #{tpu_custom_call.1} parent=5 // pred_fallthru
        _
      %p513 = scmp.le.s32.totalorder 1, %s24
      %p514 = scmp.lt.s32.totalorder %s24, 9
      %p515 = pnand %p513, %p514
      %p516 = pneg %p515
      // Predicated region
      $region77: #{tpu_custom_call.1} parent=5 // pred_check
        _
      $region78: #{tpu_custom_call.1} parent=5 // pred_check_branch
        %518 = sbr.rel (%p515) target = $region80
      $region79: #{tpu_custom_call.1} parent=5 // pred_region
        %s519 = ssub.s32 %s24, 1
        %p520 = scmp.lt.s32.totalorder %s33, 1
        %s521 = scalar_select %p520, %s33, 1
        %s522 = smul.addr %s521, 8
        %s523 = scalar_lea.vmem %s0, %s522
        %p524 = pneg %p62
        %p525 = pneg %p59
        %p526 = scmp.lt.s32.totalorder %s34, 3
        %s527 = scalar_select %p526, %s34, 3
        %s528 = smul.addr %s527, 4
        %s529 = smul.addr %s528, 4
        %s530 = scalar_lea.vmem %s1, %s529
        %p531 = pneg %p88
        %p532 = pneg %p85
        %p533 = scmp.lt.s32.totalorder %s34, 3
        %s534 = scalar_select %p533, %s34, 3
        %s535 = smul.addr %s534, 4
        %s536 = smul.addr %s535, 4
        %s537 = scalar_lea.vmem %s2, %s536
        %p538 = pneg %p114
        %p539 = pneg %p111
        %p540 = scmp.lt.s32.totalorder %s34, 3
        %s541 = scalar_select %p540, %s34, 3
        %s542 = smul.addr %s541, 4
        %s543 = smul.addr %s542, 4
        %s544 = scalar_lea.vmem %s3, %s543
        %p545 = pneg %p140
        %p546 = pneg %p137
        %p547 = scmp.lt.s32.totalorder %s34, 3
        %s548 = scalar_select %p547, %s34, 3
        %s549 = scalar_lea.vmem %s4, %s548
        %p550 = pneg %p166
        %p551 = pneg %p163
        %p552 = scmp.lt.s32.totalorder %s34, 3
        %s553 = scalar_select %p552, %s34, 3
        %s554 = scalar_lea.vmem %s5, %s553
        %p555 = pneg %p192
        %p556 = pneg %p189
        %p557 = scmp.lt.s32.totalorder %s34, 3
        %s558 = scalar_select %p557, %s34, 3
        %s559 = scalar_lea.vmem %s6, %s558
        %p560 = pneg %p218
        %p561 = pneg %p215
        %p562 = scmp.lt.s32.totalorder %s34, 3
        %s563 = scalar_select %p562, %s34, 3
        %s564 = smul.addr %s563, 4
        %s565 = scalar_lea.vmem %s7, %s564
        %p566 = pneg %p244
        %p567 = pneg %p241
        %p568 = pneg %p265
        %p569 = pneg %p262
        %p570 = pneg %p286
        %p571 = pneg %p283
        %p572 = pneg %p307
        %p573 = pneg %p304
        %p574 = pneg %p328
        %p575 = pneg %p325
        %p576 = pneg %p349
        %p577 = pneg %p346
        %p578 = pneg %p370
        %p579 = pneg %p367
        %p580 = pneg %p391
        %p581 = pneg %p388
        %p582 = pneg %p417
        %p583 = pneg %p414
        %s584 = sand.u32 %s404, 1
        %s585 = scalar_lea.sflag [#allocation5], %s584
        %s586 = sand.u32 %s404, 1
        %s587 = smul.addr %s586, 8
        %s588 = scalar_lea.vmem [#allocation4], %s587
        %p589 = scmp.lt.s32.totalorder %s33, 1
        %s590 = scalar_select %p589, %s33, 1
        %s591 = smul.addr %s590, 8
        %s592 = scalar_lea.vmem %s0, %s591
        %p593 = scmp.lt.s32.totalorder %s34, 3
        %s594 = scalar_select %p593, %s34, 3
        %s595 = smul.addr %s594, 4
        %s596 = smul.addr %s595, 4
        %s597 = scalar_lea.vmem %s1, %s596
        %p598 = scmp.lt.s32.totalorder %s34, 3
        %s599 = scalar_select %p598, %s34, 3
        %s600 = smul.addr %s599, 4
        %s601 = smul.addr %s600, 4
        %s602 = scalar_lea.vmem %s2, %s601
        %p603 = scmp.lt.s32.totalorder %s34, 3
        %s604 = scalar_select %p603, %s34, 3
        %s605 = smul.addr %s604, 4
        %s606 = smul.addr %s605, 4
        %s607 = scalar_lea.vmem %s3, %s606
        %p608 = scmp.lt.s32.totalorder %s34, 3
        %s609 = scalar_select %p608, %s34, 3
        %s610 = scalar_lea.vmem %s4, %s609
        %p611 = scmp.lt.s32.totalorder %s34, 3
        %s612 = scalar_select %p611, %s34, 3
        %s613 = scalar_lea.vmem %s5, %s612
        %p614 = scmp.lt.s32.totalorder %s34, 3
        %s615 = scalar_select %p614, %s34, 3
        %s616 = scalar_lea.vmem %s6, %s615
        %p617 = scmp.lt.s32.totalorder %s34, 3
        %s618 = scalar_select %p617, %s34, 3
        %s619 = smul.addr %s618, 4
        %s620 = scalar_lea.vmem %s7, %s619
        %p622 = scmp.eq.s32.totalorder %s34, 0
        // Predicated region
        $region81: #{tpu_custom_call.1} parent=79 // pred_check
          %p623 = pneg %p622
        $region82: #{tpu_custom_call.1} parent=79 // pred_check_branch
          %625 = sbr.rel (%p623) target = $region84
        $region83: #{tpu_custom_call.1} parent=79 // pred_region
          %v626 = vld [vmem:[%s592] sm:$0xff]
          %v627 = vpack.c.bf16 %v626, %v626
          %vm628 = vcmask 257024
          %629 = vst.msk [vmem:[#allocation2] sm:$0xf] %vm628, %v627
          %vm630 = vcmask 261120
          %631 = vst.msk [vmem:[#allocation3] sm:$0xff] %vm630, 0.0
        $region84: #{tpu_custom_call.1} parent=79 // pred_fallthru
          _
        %v632 = vld [vmem:[#allocation2] sm:$0xf]
        %v633 = vld [vmem:[%s597] sm:$0xf]
        %v634 = vld [vmem:[%s597 + $0x4] sm:$0xf]
        %v635 = vld [vmem:[%s597 + $0x8] sm:$0xf]
        %v636 = vld [vmem:[%s597 + $0xc] sm:$0xf]
        %v637 = vld [vmem:[%s610] sm:$0x1]
        %v639 = vperm.slane %v637, 0
        %v645 = vunpack.c.l.b16 %v633
        %v646 = vunpack.c.l.b16 %v634
        %v647 = vunpack.c.l.b16 %v635
        %v648 = vunpack.c.l.b16 %v636
        %v649 = vpack.c.b16 %v646, %v645
        %v650 = vpack.c.b16 %v648, %v647
        %vm653 = vcmask 261120
        %v655 = vsel %vm653, %v632, 0
        %657 = vmatpush.bf16.msra.mxu0 0
        %658 = vmatpush.bf16.msra.mxu0 0
        %659 = vmatpush.bf16.msra.mxu0 0
        %660 = vmatpush.bf16.msra.mxu0 0
        %661 = vmatpush.bf16.msra.mxu0 0
        %662 = vmatpush.bf16.msra.mxu0 0
        %663 = vmatpush.bf16.msra.mxu0 %v650
        %664 = vmatpush.bf16.msra.mxu0 %v649
        %665 = vmatmul.bf16.gmra.mxu0 %v655
        %v666 = vpop.f32.mrf.mxu0
        %v667 = vadd.f32 %v639, %v666
        %v668 = vpop.f32.mrf.mxu0
        %669 = vdwg.mxu0
        %v670 = vmul.f32 %v667, 0.35355338
        %v671 = vld [vmem:[%s602] sm:$0xf]
        %v672 = vld [vmem:[%s602 + $0x4] sm:$0xf]
        %v673 = vld [vmem:[%s602 + $0x8] sm:$0xf]
        %v674 = vld [vmem:[%s602 + $0xc] sm:$0xf]
        %v675 = vld [vmem:[%s613] sm:$0x1]
        %v677 = vperm.slane %v675, 0
        %v683 = vunpack.c.l.b16 %v671
        %v684 = vunpack.c.l.b16 %v672
        %v685 = vunpack.c.l.b16 %v673
        %v686 = vunpack.c.l.b16 %v674
        %v687 = vpack.c.b16 %v684, %v683
        %v688 = vpack.c.b16 %v686, %v685
        %691 = vmatpush.bf16.msra.mxu0 0
        %692 = vmatpush.bf16.msra.mxu0 0
        %693 = vmatpush.bf16.msra.mxu0 0
        %694 = vmatpush.bf16.msra.mxu0 0
        %695 = vmatpush.bf16.msra.mxu0 0
        %696 = vmatpush.bf16.msra.mxu0 0
        %697 = vmatpush.bf16.msra.mxu0 %v688
        %698 = vmatpush.bf16.msra.mxu0 %v687
        %699 = vmatmul.bf16.gmra.mxu0 %v655
        %v700 = vpop.f32.mrf.mxu0
        %v701 = vadd.f32 %v677, %v700
        %v702 = vpop.f32.mrf.mxu0
        %703 = vdwg.mxu0
        %v704 = vld [vmem:[%s607] sm:$0xf]
        %v705 = vld [vmem:[%s607 + $0x4] sm:$0xf]
        %v706 = vld [vmem:[%s607 + $0x8] sm:$0xf]
        %v707 = vld [vmem:[%s607 + $0xc] sm:$0xf]
        %v708 = vld [vmem:[%s616] sm:$0x1]
        %v710 = vperm.slane %v708, 0
        %v716 = vunpack.c.l.b16 %v704
        %v717 = vunpack.c.l.b16 %v705
        %v718 = vunpack.c.l.b16 %v706
        %v719 = vunpack.c.l.b16 %v707
        %v720 = vpack.c.b16 %v717, %v716
        %v721 = vpack.c.b16 %v719, %v718
        %724 = vmatpush.bf16.msra.mxu0 0
        %725 = vmatpush.bf16.msra.mxu0 0
        %726 = vmatpush.bf16.msra.mxu0 0
        %727 = vmatpush.bf16.msra.mxu0 0
        %728 = vmatpush.bf16.msra.mxu0 0
        %729 = vmatpush.bf16.msra.mxu0 0
        %730 = vmatpush.bf16.msra.mxu0 %v721
        %731 = vmatpush.bf16.msra.mxu0 %v720
        %732 = vmatmul.bf16.gmra.mxu0 %v655
        %v733 = vpop.f32.mrf.mxu0
        %v734 = vadd.f32 %v710, %v733
        %v735 = vpop.f32.mrf.mxu0
        %736 = vdwg.mxu0
        %v737 = vpack.c.bf16 %v670, %v670
        %v738 = vpack.c.bf16 %v701, %v701
        %v739 = vpack.c.bf16 %v734, %v734
        %vm740 = vcmask 64512
        %v742 = vsel %vm740, %v737, 0
        %v745 = vsel %vm740, %v738, 0
        %747 = vmatpush.bf16.xpose.msra.mxu0 0
        %748 = vmatpush.bf16.xpose.msra.mxu0 0
        %749 = vmatpush.bf16.xpose.msra.mxu0 0
        %750 = vmatpush.bf16.xpose.msra.mxu0 0
        %751 = vmatpush.bf16.xpose.msra.mxu0 0
        %752 = vmatpush.bf16.xpose.msra.mxu0 0
        %753 = vmatpush.bf16.xpose.msra.mxu0 0
        %754 = vmatpush.bf16.xpose.msra.mxu0 %v745
        %755 = vmatmul.bf16.gmra.mxu0 %v742
        %v756 = vpop.f32.mrf.mxu0
        %v757 = vadd.f32 0.0, %v756
        %v758 = vpop.f32.mrf.mxu0
        %759 = vdwg.mxu0
        %v760 = vsel %vm740, %v757, -inf
        %761 = vmax.xlane.f32.xlu0 %v760
        %v762 = vpop.xlane.xlu0 %761
        %v763 = vsub.f32 %v757, %v762
        %v764 = vmul.f32 %v763, 1.442695
        %v765 = vpow.pop %v764
        %v766 = vsel %vm740, %v765, 0.0
        %767 = vadd.xlane.f32.xlu0 %v766
        %v768 = vpop.xlane.xlu0 %767
        %v769 = vrcp.pop %v768
        %v770 = vmul.f32 %v765, %v769
        %v771 = vpack.c.bf16 %v770, %v770
        %v773 = vsel %vm740, %v771, 0
        %vm775 = vcmask 1043456
        %v777 = vsel %vm775, %v739, 0
        %779 = vmatpush.bf16.msra.mxu0 0
        %780 = vmatpush.bf16.msra.mxu0 0
        %781 = vmatpush.bf16.msra.mxu0 0
        %782 = vmatpush.bf16.msra.mxu0 0
        %783 = vmatpush.bf16.msra.mxu0 0
        %784 = vmatpush.bf16.msra.mxu0 0
        %785 = vmatpush.bf16.msra.mxu0 0
        %786 = vmatpush.bf16.msra.mxu0 %v777
        %787 = vmatmul.bf16.gmra.mxu0 %v773
        %v788 = vpop.f32.mrf.mxu0
        %v789 = vadd.f32 0.0, %v788
        %v790 = vpop.f32.mrf.mxu0
        %791 = vdwg.mxu0
        %v792 = vld [vmem:[#allocation3] sm:$0xff]
        %v793 = vpack.c.bf16 %v789, %v789
        %v794 = vld [vmem:[%s620] sm:$0xf]
        %v796 = vsel %vm740, %v793, 0
        %v799 = vsel %vm775, %v794, 0
        %801 = vmatpush.bf16.msra.mxu0 0
        %802 = vmatpush.bf16.msra.mxu0 0
        %803 = vmatpush.bf16.msra.mxu0 0
        %804 = vmatpush.bf16.msra.mxu0 0
        %805 = vmatpush.bf16.msra.mxu0 0
        %806 = vmatpush.bf16.msra.mxu0 0
        %807 = vmatpush.bf16.msra.mxu0 0
        %808 = vmatpush.bf16.msra.mxu0 %v799
        %809 = vmatmul.bf16.gmra.mxu0 %v796
        %v810 = vpop.f32.mrf.mxu0
        %v811 = vadd.f32 0.0, %v810
        %v812 = vpop.f32.mrf.mxu0
        %813 = vdwg.mxu0
        %v814 = vadd.f32 %v792, %v811
        %815 = vst.msk [vmem:[#allocation3] sm:$0xff] %vm653, %v814
        %p816 = scmp.eq.s32.totalorder %s34, 3
        // Predicated region
        $region85: #{tpu_custom_call.1} parent=79 // pred_check
          %p817 = pneg %p816
        $region86: #{tpu_custom_call.1} parent=79 // pred_check_branch
          %819 = sbr.rel (%p817) target = $region88
        $region87: #{tpu_custom_call.1} parent=79 // pred_region
          %v820 = vld [vmem:[%s592] sm:$0xff]
          %v821 = vld [vmem:[#allocation3] sm:$0xff]
          %v822 = vld [vmem:[%s8] sm:$0x1]
          %v824 = vperm.slane %v822, 0
          %v826 = vadd.f32 %v821, %v824
          %v827 = vsel %vm653, %v826, 0.0
          %828 = vadd.xlane.f32.xlu0 %v827
          %v829 = vpop.xlane.xlu0 %828
          %v830 = vrcp.pop 32.0
          %v831 = vmul.f32 32.0, %v830
          %v832 = vsub.f32 1.0, %v831
          %v833 = vmul.f32 %v830, %v832
          %v834 = vadd.f32 %v830, %v833
          %vm835 = vweird.f32 %v830
          %v836 = vsel %vm835, %v830, %v834
          %v837 = vmul.f32 %v829, %v836
          %v838 = vsub.f32 %v826, %v837
          %v839 = vmul.f32 %v838, %v838
          %v840 = vsel %vm653, %v839, 0.0
          %841 = vadd.xlane.f32.xlu0 %v840
          %v842 = vpop.xlane.xlu0 %841
          %v843 = vmul.f32 %v842, %v836
          %v844 = vadd.f32 %v843, 1e-05
          %v845 = vrsqrt.pop %v844
          %v846 = vmul.f32 %v845, %v844
          %v847 = vmul.f32 %v846, %v845
          %v848 = vmul.f32 0.5, %v847
          %v849 = vsub.f32 1.5, %v848
          %v850 = vmul.f32 %v845, %v849
          %vm851 = vweird.f32 %v844
          %vm852 = vweird.f32 %v845
          %vm853 = vmor %vm851, %vm852
          %v854 = vsel %vm853, %v845, %v850
          %v855 = vmul.f32 %v838, %v854
          %v856 = vld [vmem:[%s9] sm:$0x1]
          %v858 = vperm.slane %v856, 0
          %v860 = vmul.f32 %v855, %v858
          %v861 = vld [vmem:[%s10] sm:$0x1]
          %v863 = vperm.slane %v861, 0
          %v865 = vadd.f32 %v860, %v863
          %v866 = vadd.f32 %v865, %v820
          %v867 = vpack.c.bf16 %v866, %v866
          %v868 = vld [vmem:[%s11] sm:$0xf]
          %v869 = vld [vmem:[%s11 + $0x4] sm:$0xf]
          %v870 = vld [vmem:[%s11 + $0x8] sm:$0xf]
          %v871 = vld [vmem:[%s11 + $0xc] sm:$0xf]
          %v872 = vld [vmem:[%s12] sm:$0x1]
          %v874 = vperm.slane %v872, 0
          %v880 = vunpack.c.l.b16 %v868
          %v881 = vunpack.c.l.b16 %v869
          %v882 = vunpack.c.l.b16 %v870
          %v883 = vunpack.c.l.b16 %v871
          %v884 = vpack.c.b16 %v881, %v880
          %v885 = vpack.c.b16 %v883, %v882
          %v889 = vsel %vm653, %v867, 0
          %891 = vmatpush.bf16.msra.mxu0 0
          %892 = vmatpush.bf16.msra.mxu0 0
          %893 = vmatpush.bf16.msra.mxu0 0
          %894 = vmatpush.bf16.msra.mxu0 0
          %895 = vmatpush.bf16.msra.mxu0 0
          %896 = vmatpush.bf16.msra.mxu0 0
          %897 = vmatpush.bf16.msra.mxu0 %v885
          %898 = vmatpush.bf16.msra.mxu0 %v884
          %899 = vmatmul.bf16.gmra.mxu0 %v889
          %v900 = vpop.f32.mrf.mxu0
          %v901 = vadd.f32 %v874, %v900
          %v902 = vpop.f32.mrf.mxu0
          %903 = vdwg.mxu0
          %v904 = vmul.f32 %v901, %v901
          %v905 = vmul.f32 %v904, %v901
          %v906 = vmul.f32 %v901, 0.5
          %v907 = vmul.f32 %v901, 0.044715
          %v908 = vmul.f32 %v907, %v905
          %v909 = vmul.f32 %v908, 0.7978846
          %v910 = vtanh.pop %v909
          %v911 = vadd.f32 %v910, 1.0
          %v912 = vmul.f32 %v906, %v911
          %v913 = vpack.c.bf16 %v912, %v912
          %v914 = vld [vmem:[%s13] sm:$0xf]
          %v915 = vld [vmem:[%s13 + $0x4] sm:$0xf]
          %v916 = vld [vmem:[%s13 + $0x8] sm:$0xf]
          %v917 = vld [vmem:[%s13 + $0xc] sm:$0xf]
          %v918 = vld [vmem:[%s13 + $0x10] sm:$0xf]
          %v919 = vld [vmem:[%s13 + $0x14] sm:$0xf]
          %v920 = vld [vmem:[%s13 + $0x18] sm:$0xf]
          %v921 = vld [vmem:[%s13 + $0x1c] sm:$0xf]
          %v922 = vld [vmem:[%s13 + $0x20] sm:$0xf]
          %v923 = vld [vmem:[%s13 + $0x24] sm:$0xf]
          %v924 = vld [vmem:[%s13 + $0x28] sm:$0xf]
          %v925 = vld [vmem:[%s13 + $0x2c] sm:$0xf]
          %v926 = vld [vmem:[%s13 + $0x30] sm:$0xf]
          %v927 = vld [vmem:[%s13 + $0x34] sm:$0xf]
          %v928 = vld [vmem:[%s13 + $0x38] sm:$0xf]
          %v929 = vld [vmem:[%s13 + $0x3c] sm:$0xf]
          %v930 = vld [vmem:[%s14] sm:$0x1]
          %v932 = vperm.slane %v930, 0
          %v950 = vunpack.c.l.b16 %v914
          %v951 = vunpack.c.l.b16 %v915
          %v952 = vunpack.c.l.b16 %v916
          %v953 = vunpack.c.l.b16 %v917
          %v954 = vunpack.c.l.b16 %v918
          %v955 = vunpack.c.l.b16 %v919
          %v956 = vunpack.c.l.b16 %v920
          %v957 = vunpack.c.l.b16 %v921
          %v958 = vunpack.c.l.b16 %v922
          %v959 = vunpack.c.l.b16 %v923
          %v960 = vunpack.c.l.b16 %v924
          %v961 = vunpack.c.l.b16 %v925
          %v962 = vunpack.c.l.b16 %v926
          %v963 = vunpack.c.l.b16 %v927
          %v964 = vunpack.c.l.b16 %v928
          %v965 = vunpack.c.l.b16 %v929
          %v966 = vpack.c.b16 %v951, %v950
          %v967 = vpack.c.b16 %v953, %v952
          %v968 = vpack.c.b16 %v955, %v954
          %v969 = vpack.c.b16 %v957, %v956
          %v970 = vpack.c.b16 %v959, %v958
          %v971 = vpack.c.b16 %v961, %v960
          %v972 = vpack.c.b16 %v963, %v962
          %v973 = vpack.c.b16 %v965, %v964
          %982 = vmatpush.bf16.msra.mxu0 %v973
          %983 = vmatpush.bf16.msra.mxu0 %v972
          %984 = vmatpush.bf16.msra.mxu0 %v971
          %985 = vmatpush.bf16.msra.mxu0 %v970
          %986 = vmatpush.bf16.msra.mxu0 %v969
          %987 = vmatpush.bf16.msra.mxu0 %v968
          %988 = vmatpush.bf16.msra.mxu0 %v967
          %989 = vmatpush.bf16.msra.mxu0 %v966
          %990 = vmatmul.bf16.gmra.mxu0 %v913
          %v991 = vpop.f32.mrf.mxu0
          %v992 = vadd.f32 %v932, %v991
          %v993 = vpop.f32.mrf.mxu0
          %994 = vdwg.mxu0
          %v995 = vadd.f32 %v992, %v866
          %996 = vst.msk [vmem:[%s588] sm:$0xff] %vm653, %v995
        $region88: #{tpu_custom_call.1} parent=79 // pred_fallthru
          _
        %s997 = sand.u32 %s404, 1
        %s998 = scalar_lea.sflag [#allocation5], %s997
        %s999 = sand.u32 %s404, 1
        %s1000 = smul.addr %s999, 8
        %s1001 = scalar_lea.vmem [#allocation4], %s1000
        // Predicated region
        $region89: #{tpu_custom_call.1} parent=79 // pred_check
          %p1002 = pneg %p414
        $region90: #{tpu_custom_call.1} parent=79 // pred_check_branch
          %1004 = sbr.rel (%p1002) target = $region92
        $region91: #{tpu_custom_call.1} parent=79 // pred_region
          %1006 = vsyncadd %s998, 0
          %s1007 = smul.addr %s33, 8
          %s1008 = scalar_lea.hbm %s15, %s1007
          %s1010 = sshll.u32 %s1001, 4
          %s1011 = int_to_ptr.vmem [resolvable:$true] %s1010
          %s1012 = sshll.u32 %s1008, 4
          %s1013 = int_to_ptr.hbm [resolvable:$true] %s1012
          %1015 = dma.vmem_to_hbm [thread:$0]  %s1011, 128, %s1013, %s998
        $region92: #{tpu_custom_call.1} parent=79 // pred_fallthru
          _
      $region80: #{tpu_custom_call.1} parent=5 // pred_fallthru
        _
      %p1016 = scmp.le.s32.totalorder 2, %s24
      // Predicated region
      $region93: #{tpu_custom_call.1} parent=5 // pred_check
        %p1017 = pneg %p1016
      $region94: #{tpu_custom_call.1} parent=5 // pred_check_branch
        %1019 = sbr.rel (%p1017) target = $region96
      $region95: #{tpu_custom_call.1} parent=5 // pred_region
        %s1020 = ssub.s32 %s24, 2
        // Predicated region
        $region97: #{tpu_custom_call.1} parent=95 // pred_check
          %p1021 = pneg %p420
        $region98: #{tpu_custom_call.1} parent=95 // pred_check_branch
          %1023 = sbr.rel (%p1021) target = $region100
        $region99: #{tpu_custom_call.1} parent=95 // pred_region
          %s1024 = sand.u32 %s405, 1
          %s1025 = scalar_lea.sflag [#allocation5], %s1024
          %s1026 = sand.u32 %s405, 1
          %s1027 = smul.addr %s1026, 8
          %s1028 = scalar_lea.vmem [#allocation4], %s1027
          %1030 = dma.done %s1025, 128
        $region100: #{tpu_custom_call.1} parent=95 // pred_fallthru
          _
      $region96: #{tpu_custom_call.1} parent=5 // pred_fallthru
        _
    $region6: #{tpu_custom_call.1} parent=1 // loop_footer
      %s28 = sadd.s32 1, %s24
    $region7: #{tpu_custom_call.1} parent=1 // loop_footer_branch
      %23 = sbr.rel target = $region3
    $region8: #{tpu_custom_call.1} parent=1 // loop_exit
      _
    %1031 = vsyncpa [#allocation5], 1
    %s1032 = scalar_lea.sflag [#allocation5], 1
    %1033 = vsyncpa %s1032, 1

</llo_original>
